<compile_context>
chip_gen: v5e
topology: v5e:2x2
jax: 0.10.0
libtpu: 0.0.40
codegen_flags: <defaults>
</compile_context>

<pallas_src>
import math
import functools

import jax
import jax.numpy as jnp
from jax import lax
from jax.experimental import pallas as pl
from jax.experimental.pallas import tpu as pltpu


_SQRT_HALF = 0.7071067811865476  # 1 / sqrt(2)
_LN_EPS = 1e-12


def _epilogue(h, gamma, beta, inv_h):
    """Exact (erf) gelu + LayerNorm over the hidden (last) axis. All f32."""
    h = h * 0.5 * (1.0 + lax.erf(h * _SQRT_HALF))
    u = jnp.sum(h, axis=-1, keepdims=True) * inv_h
    d = h - u
    s = jnp.sum(d * d, axis=-1, keepdims=True) * inv_h
    return gamma * (d * lax.rsqrt(s + _LN_EPS)) + beta


def _resident_kernel(x_ref, w_ref, c_ref, o_ref, *, inv_h, cast_dtype, precision):
    # x_ref: (TM, H)  w_ref: (H, H) resident  c_ref: (3, H) = bias/gamma/beta
    x = x_ref[...]
    if cast_dtype is not None:
        x = x.astype(cast_dtype)
    h = jnp.dot(x, w_ref[...], preferred_element_type=jnp.float32,
                precision=precision)
    c = c_ref[...].astype(jnp.float32)
    h = h + c[0:1, :]
    o_ref[...] = _epilogue(h, c[1:2, :], c[2:3, :], inv_h).astype(o_ref.dtype)


def _ktiled_kernel(x_ref, w_ref, c_ref, o_ref, acc_ref, *, inv_h, cast_dtype,
                   precision):
    # x_ref: (TM, TK)  w_ref: (TK, H)  acc_ref: (TM, H) f32 accumulator
    k = pl.program_id(1)

    @pl.when(k == 0)
    def _():
        acc_ref[...] = jnp.zeros_like(acc_ref)

    x = x_ref[...]
    if cast_dtype is not None:
        x = x.astype(cast_dtype)
    acc_ref[...] += jnp.dot(x, w_ref[...], preferred_element_type=jnp.float32,
                            precision=precision)

    @pl.when(k == pl.num_programs(1) - 1)
    def _():
        c = c_ref[...].astype(jnp.float32)
        h = acc_ref[...] + c[0:1, :]
        o_ref[...] = _epilogue(h, c[1:2, :], c[2:3, :], inv_h).astype(o_ref.dtype)


def _round_up(x, m):
    return (x + m - 1) // m * m


def _vmem_capacity_bytes():
    try:
        return int(pltpu.get_tpu_info().vmem_capacity_bytes)
    except Exception:
        return 64 * 1024 * 1024  # conservative: v7x per-TC VMEM


def bert_prediction_head_transform(hidden_states, w, b, gamma, beta, *,
                                   tm=512, matmul_dtype=jnp.bfloat16,
                                   force_tk=None):
    """hidden_states: [B,S,H]; w: [H,H] stored (in,out) == nn.Linear weight^T;
    b/gamma/beta: [H].

    matmul_dtype=jnp.bfloat16 (default): MXU-native operands, f32 accumulation.
    matmul_dtype=None: operands stay in their dtype; f32 uses HIGHEST precision.
    """
    B, S, H = hidden_states.shape
    N = B * S
    x = hidden_states.reshape(N, H)
    out_dtype = hidden_states.dtype

    # Down-cast matmul operands if requested: weight in the wrapper (read once,
    # halves its VMEM/HBM footprint), activations in-kernel (their HBM DMA is
    # unchanged; the cast is a cheap VPU op on the already-loaded tile).
    cast_dtype = None
    w_c = w
    if matmul_dtype is not None:
        md = jnp.dtype(matmul_dtype)
        if jnp.dtype(w.dtype).itemsize > md.itemsize:
            w_c = w.astype(matmul_dtype)
        if jnp.dtype(x.dtype).itemsize > md.itemsize:
            cast_dtype = matmul_dtype
    op_dtype = cast_dtype if cast_dtype is not None else x.dtype
    # Full-accuracy multi-pass MXU matmul only when operands stay f32.
    precision = (lax.Precision.HIGHEST
                 if jnp.dtype(op_dtype) == jnp.float32 else None)

    x_bytes = jnp.dtype(x.dtype).itemsize
    w_bytes = jnp.dtype(w_c.dtype).itemsize
    out_bytes = jnp.dtype(out_dtype).itemsize

    # Row tile: sublane-aligned, as large as requested but never beyond N.
    pack = 8 * max(1, 4 // x_bytes)          # 8 rows (f32) / 16 rows (bf16)
    tm_eff = min(_round_up(tm, pack), _round_up(N, pack))
    # v7x has two TensorCores: make sure the "parallel" row axis has >=2 steps
    # whenever there is more than one sublane group of rows (harmless on 1-TC).
    if pl.cdiv(N, tm_eff) < 2 and N > pack:
        tm_eff = _round_up(pl.cdiv(N, 2), pack)
    grid_n = pl.cdiv(N, tm_eff)

    # Generation-aware VMEM budget (128 MiB v5e/v6e, 64 MiB v7x) with ~15%
    # headroom for Mosaic internal scratch / semaphores.
    budget = int(_vmem_capacity_bytes() * 0.85)

    consts = jnp.stack([b.astype(jnp.float32),
                        gamma.astype(jnp.float32),
                        beta.astype(jnp.float32)], axis=0)  # (3, H)

    inv_h = 1.0 / H

    # Resident weight vs K-tiled accumulator path (needed once H^2*w_bytes no
    # longer fits VMEM — on v7x that is roughly H >~ 2.8k bf16 / 2k f32).
    tiles_bytes = 2 * tm_eff * H * x_bytes + 2 * tm_eff * H * out_bytes
    resident_need = tiles_bytes + H * H * w_bytes + 3 * H * 4
    tk = None
    if force_tk is not None:
        tk = int(force_tk)
    elif resident_need > budget:
        cands = [t for t in range(128, H, 128) if H % t == 0]
        for t in sorted(cands, reverse=True):
            need = (2 * tm_eff * t * x_bytes + 2 * tm_eff * H * out_bytes
                    + 2 * t * H * w_bytes + tm_eff * H * 4 + 3 * H * 4)
            if need <= budget:
                tk = t
                break
        if tk is None and cands:
            tk = cands[0]
    use_ktiled = (tk is not None) and (0 < tk < H) and (H % tk == 0)

    cost = pl.CostEstimate(
        flops=2 * N * H * H + 10 * N * H,
        transcendentals=N * H,
        bytes_accessed=(N * H * x_bytes + H * H * w_bytes + 3 * H * 4
                        + N * H * out_bytes),
    )

    def _run(single_buffer):
        # Weight / constants are grid-invariant: a second pipeline buffer for
        # them is pure VMEM waste, so request single-buffering when possible.
        inv_mode = {"pipeline_mode": pl.Buffered(1)} if single_buffer else {}
        w_mult = 1 if single_buffer else 2
        c_mult = 1 if single_buffer else 2

        if not use_ktiled:
            kernel = functools.partial(_resident_kernel, inv_h=inv_h,
                                       cast_dtype=cast_dtype,
                                       precision=precision)
            grid = (grid_n,)
            in_specs = [
                pl.BlockSpec((tm_eff, H), lambda i: (i, 0)),            # x rows
                pl.BlockSpec((H, H), lambda i: (0, 0), **inv_mode),     # weight
                pl.BlockSpec((3, H), lambda i: (0, 0), **inv_mode),     # b/g/beta
            ]
            out_specs = pl.BlockSpec((tm_eff, H), lambda i: (i, 0))
            scratch_shapes = []
            semantics = ("parallel",)
            need = tiles_bytes + w_mult * H * H * w_bytes + c_mult * 3 * H * 4
        else:
            kernel = functools.partial(_ktiled_kernel, inv_h=inv_h,
                                       cast_dtype=cast_dtype,
                                       precision=precision)
            grid = (grid_n, H // tk)
            in_specs = [
                pl.BlockSpec((tm_eff, tk), lambda i, k: (i, k)),         # x tile
                pl.BlockSpec((tk, H), lambda i, k: (k, 0)),              # w K-tile
                pl.BlockSpec((3, H), lambda i, k: (0, 0), **inv_mode),   # consts
            ]
            out_specs = pl.BlockSpec((tm_eff, H), lambda i, k: (i, 0))
            scratch_shapes = [pltpu.VMEM((tm_eff, H), jnp.float32)]
            semantics = ("parallel", "arbitrary")
            need = (2 * tm_eff * tk * x_bytes + 2 * tm_eff * H * out_bytes
                    + 2 * tk * H * w_bytes + tm_eff * H * 4
                    + c_mult * 3 * H * 4)

        vmem_limit = int(min(max(need + 4 * 1024 * 1024, 32 * 1024 * 1024),
                             budget))

        return pl.pallas_call(
            kernel,
            out_shape=jax.ShapeDtypeStruct((N, H), out_dtype),
            grid_spec=pltpu.PrefetchScalarGridSpec(
                num_scalar_prefetch=0,
                grid=grid,
                in_specs=in_specs,
                out_specs=out_specs,
                scratch_shapes=scratch_shapes,
            ),
            compiler_params=pltpu.CompilerParams(
                dimension_semantics=semantics,
                vmem_limit_bytes=vmem_limit,
            ),
            cost_estimate=cost,
        )(x, w_c, consts)

    try:
        out = _run(single_buffer=True)
    except Exception:
        # Conservative fallback if this runtime rejects Buffered(1) single-
        # buffering of the invariant operands.
        out = _run(single_buffer=False)

    return out.reshape(B, S, H)


def _reference(hidden_states, w, b, gamma, beta):
    x = hidden_states.astype(jnp.float32)
    h = jnp.dot(x, w.astype(jnp.float32), precision=lax.Precision.HIGHEST) + b
    h = h * 0.5 * (1.0 + lax.erf(h / math.sqrt(2.0)))
    u = jnp.mean(h, axis=-1, keepdims=True)
    s = jnp.mean((h - u) ** 2, axis=-1, keepdims=True)
    hn = (h - u) / jnp.sqrt(s + 1e-12)
    return gamma * hn + beta


if __name__ == "__main__":
    B, S, H = 2, 8, 32  # batch, seq, hidden_size

    key = jax.random.PRNGKey(0)
    k_x, k_w, k_b, k_g, k_beta = jax.random.split(key, 5)

    hidden_states = jax.random.normal(k_x, (B, S, H), dtype=jnp.float32)
    # nn.Linear weight is (out, in); we store its transpose (in, out) so the
    # kernel computes x @ w directly (== x @ W^T).
    w = jax.random.normal(k_w, (H, H), dtype=jnp.float32) * (1.0 / math.sqrt(H))
    b = jax.random.normal(k_b, (H,), dtype=jnp.float32) * 0.02
    gamma = 1.0 + 0.1 * jax.random.normal(k_g, (H,), dtype=jnp.float32)
    beta = 0.1 * jax.random.normal(k_beta, (H,), dtype=jnp.float32)

    ref = _reference(hidden_states, w, b, gamma, beta)

    # 1) Default path: bf16 MXU operands + f32 accumulation. Looser tolerance
    #    is the deliberate precision trade of the bf16 matmul, not a bug.
    out = jax.block_until_ready(
        bert_prediction_head_transform(hidden_states, w, b, gamma, beta))
    assert out.shape == (B, S, H)
    assert jnp.allclose(out, ref, atol=2e-2, rtol=2e-2), "mismatch (bf16 matmul)"

    # 2) Exact f32 path.
    out32 = jax.block_until_ready(
        bert_prediction_head_transform(hidden_states, w, b, gamma, beta,
                                       matmul_dtype=None))
    assert jnp.allclose(out32, ref, atol=1e-5, rtol=1e-5), "mismatch (f32 matmul)"

    # 3) Row count that doesn't divide the tile (Pallas edge-block masking,
    #    no jnp.pad copy).
    hs2 = jax.random.normal(k_x, (1, 13, H), dtype=jnp.float32)
    out2 = jax.block_until_ready(
        bert_prediction_head_transform(hs2, w, b, gamma, beta,
                                       matmul_dtype=None))
    ref2 = _reference(hs2, w, b, gamma, beta)
    assert out2.shape == (1, 13, H)
    assert jnp.allclose(out2, ref2, atol=1e-5, rtol=1e-5), "mismatch (ragged rows)"

    # 4) K-tiled accumulator path (the large-H / v7x fallback), forced at H=256.
    H2 = 256
    kx2, kw2, kb2, kg2, kbeta2 = jax.random.split(jax.random.PRNGKey(1), 5)
    hs3 = jax.random.normal(kx2, (2, 8, H2), dtype=jnp.float32)
    w3 = jax.random.normal(kw2, (H2, H2), dtype=jnp.float32) * (1.0 / math.sqrt(H2))
    b3 = jax.random.normal(kb2, (H2,), dtype=jnp.float32) * 0.02
    g3 = 1.0 + 0.1 * jax.random.normal(kg2, (H2,), dtype=jnp.float32)
    beta3 = 0.1 * jax.random.normal(kbeta2, (H2,), dtype=jnp.float32)
    out3 = jax.block_until_ready(
        bert_prediction_head_transform(hs3, w3, b3, g3, beta3,
                                       matmul_dtype=None, force_tk=128))
    ref3 = _reference(hs3, w3, b3, g3, beta3)
    assert out3.shape == (2, 8, H2)
    assert jnp.allclose(out3, ref3, atol=1e-4, rtol=1e-4), "mismatch (K-tiled)"

    print("KERNEL_OK")
</pallas_src>

<mosaic_0001>
module attributes {stable_mosaic.version = 11 : i64} {
  func.func @_resident_kernel(%arg0: i32, %arg1: memref<8x32xf32, #tpu.memory_space<vmem>>, %arg2: memref<32x32xbf16, #tpu.memory_space<vmem>>, %arg3: memref<3x32xf32, #tpu.memory_space<vmem>>, %arg4: memref<8x32xf32, #tpu.memory_space<vmem>>) attributes {dimension_semantics = [#tpu.dimension_semantics<parallel>], iteration_bounds = array<i64: 2>, scalar_prefetch = 0 : i64, scratch_operands = 0 : i64, tpu.core_type = #tpu.core_type<tc>, window_params = [{transform_indices = @transform_0, window_bounds = array<i64: 8, 32>}, {pipeline_mode = #tpu.pipeline_mode<synchronous>, transform_indices = @transform_1, window_bounds = array<i64: 32, 32>}, {pipeline_mode = #tpu.pipeline_mode<synchronous>, transform_indices = @transform_2, window_bounds = array<i64: 3, 32>}, {transform_indices = @transform_3, window_bounds = array<i64: 8, 32>}]} {
    %c0 = arith.constant 0 : index
    %c0_0 = arith.constant 0 : index
    %0 = vector.load %arg1[%c0, %c0_0] : memref<8x32xf32, #tpu.memory_space<vmem>>, vector<8x32xf32>
    %1 = arith.truncf %0 : vector<8x32xf32> to vector<8x32xbf16>
    %c0_1 = arith.constant 0 : index
    %c0_2 = arith.constant 0 : index
    %2 = vector.load %arg2[%c0_1, %c0_2] : memref<32x32xbf16, #tpu.memory_space<vmem>>, vector<32x32xbf16>
    %cst = arith.constant dense<0.000000e+00> : vector<8x32xf32>
    %3 = tpu.matmul %1, %2, %cst {dimension_numbers = #tpu.dot_dimension_numbers<[1], [0], [0], [1], [0, 0, 1, 1], [], []>} : vector<8x32xbf16>, vector<32x32xbf16>, vector<8x32xf32> -> vector<8x32xf32>
    %c0_3 = arith.constant 0 : index
    %c0_4 = arith.constant 0 : index
    %4 = vector.load %arg3[%c0_3, %c0_4] : memref<3x32xf32, #tpu.memory_space<vmem>>, vector<3x32xf32>
    %5 = vector.extract_strided_slice %4 {offsets = [0, 0], sizes = [1, 32], strides = [1, 1]} : vector<3x32xf32> to vector<1x32xf32>
    %6 = vector.broadcast %5 : vector<1x32xf32> to vector<8x32xf32>
    %7 = arith.addf %3, %6 : vector<8x32xf32>
    %8 = vector.extract_strided_slice %4 {offsets = [1, 0], sizes = [1, 32], strides = [1, 1]} : vector<3x32xf32> to vector<1x32xf32>
    %9 = vector.extract_strided_slice %4 {offsets = [2, 0], sizes = [1, 32], strides = [1, 1]} : vector<3x32xf32> to vector<1x32xf32>
    %cst_5 = arith.constant 5.000000e-01 : f32
    %10 = vector.broadcast %cst_5 : f32 to vector<8x32xf32>
    %11 = arith.mulf %7, %10 : vector<8x32xf32>
    %cst_6 = arith.constant 0.707106769 : f32
    %12 = vector.broadcast %cst_6 : f32 to vector<8x32xf32>
    %13 = arith.mulf %7, %12 : vector<8x32xf32>
    %14 = math.erf %13 : vector<8x32xf32>
    %cst_7 = arith.constant 1.000000e+00 : f32
    %15 = vector.broadcast %cst_7 : f32 to vector<8x32xf32>
    %16 = arith.addf %15, %14 : vector<8x32xf32>
    %17 = arith.mulf %11, %16 : vector<8x32xf32>
    %cst_8 = arith.constant dense<0.000000e+00> : vector<8xf32>
    %18 = vector.multi_reduction <add>, %17, %cst_8 [1] : vector<8x32xf32> to vector<8xf32>
    %19 = vector.shape_cast %18 : vector<8xf32> to vector<8x1xf32>
    %cst_9 = arith.constant 3.125000e-02 : f32
    %20 = vector.broadcast %cst_9 : f32 to vector<8x1xf32>
    %21 = arith.mulf %19, %20 : vector<8x1xf32>
    %22 = vector.broadcast %21 : vector<8x1xf32> to vector<8x32xf32>
    %23 = arith.subf %17, %22 : vector<8x32xf32>
    %24 = arith.mulf %23, %23 : vector<8x32xf32>
    %cst_10 = arith.constant dense<0.000000e+00> : vector<8xf32>
    %25 = vector.multi_reduction <add>, %24, %cst_10 [1] : vector<8x32xf32> to vector<8xf32>
    %26 = vector.shape_cast %25 : vector<8xf32> to vector<8x1xf32>
    %cst_11 = arith.constant 3.125000e-02 : f32
    %27 = vector.broadcast %cst_11 : f32 to vector<8x1xf32>
    %28 = arith.mulf %26, %27 : vector<8x1xf32>
    %cst_12 = arith.constant 9.99999996E-13 : f32
    %29 = vector.broadcast %cst_12 : f32 to vector<8x1xf32>
    %30 = arith.addf %28, %29 : vector<8x1xf32>
    %31 = math.rsqrt %30 : vector<8x1xf32>
    %32 = vector.broadcast %31 : vector<8x1xf32> to vector<8x32xf32>
    %33 = arith.mulf %23, %32 : vector<8x32xf32>
    %34 = vector.broadcast %8 : vector<1x32xf32> to vector<8x32xf32>
    %35 = arith.mulf %34, %33 : vector<8x32xf32>
    %36 = vector.broadcast %9 : vector<1x32xf32> to vector<8x32xf32>
    %37 = arith.addf %35, %36 : vector<8x32xf32>
    %c0_13 = arith.constant 0 : index
    %c0_14 = arith.constant 0 : index
    %38 = vector.load %arg4[%c0_13, %c0_14] : memref<8x32xf32, #tpu.memory_space<vmem>>, vector<8x32xf32>
    tpu.vector_store %arg4[%c0_13, %c0_14], %37 {strides = array<i32>} : memref<8x32xf32, #tpu.memory_space<vmem>>, vector<8x32xf32>,
    return
  }
  func.func @transform_0(%arg0: i32) -> (i32, i32) {
    %c0_i32 = arith.constant 0 : i32
    %c0_i32_0 = arith.constant 0 : i32
    return %arg0, %c0_i32 : i32, i32
  }
  func.func @transform_1(%arg0: i32) -> (i32, i32) {
    %c0_i32 = arith.constant 0 : i32
    %c0_i32_0 = arith.constant 0 : i32
    %c0_i32_1 = arith.constant 0 : i32
    return %c0_i32, %c0_i32_0 : i32, i32
  }
  func.func @transform_2(%arg0: i32) -> (i32, i32) {
    %c0_i32 = arith.constant 0 : i32
    %c0_i32_0 = arith.constant 0 : i32
    %c0_i32_1 = arith.constant 0 : i32
    return %c0_i32, %c0_i32_0 : i32, i32
  }
  func.func @transform_3(%arg0: i32) -> (i32, i32) {
    %c0_i32 = arith.constant 0 : i32
    %c0_i32_0 = arith.constant 0 : i32
    return %arg0, %c0_i32 : i32, i32
  }
}

module attributes {stable_mosaic.version = 11 : i64} {
  func.func @_resident_kernel(%arg0: i32, %arg1: memref<8x32xf32, #tpu.memory_space<vmem>>, %arg2: memref<32x32xbf16, #tpu.memory_space<vmem>>, %arg3: memref<3x32xf32, #tpu.memory_space<vmem>>, %arg4: memref<8x32xf32, #tpu.memory_space<vmem>>) attributes {dimension_semantics = [#tpu.dimension_semantics<parallel>], iteration_bounds = array<i64: 2>, scalar_prefetch = 0 : i64, scratch_operands = 0 : i64, tpu.core_type = #tpu.core_type<tc>, window_params = [{transform_indices = @transform_0, window_bounds = array<i64: 8, 32>}, {pipeline_mode = #tpu.pipeline_mode<synchronous>, transform_indices = @transform_1, window_bounds = array<i64: 32, 32>}, {pipeline_mode = #tpu.pipeline_mode<synchronous>, transform_indices = @transform_2, window_bounds = array<i64: 3, 32>}, {transform_indices = @transform_3, window_bounds = array<i64: 8, 32>}]} {
    %c0 = arith.constant 0 : index
    %c0_0 = arith.constant 0 : index
    %0 = vector.load %arg1[%c0, %c0_0] : memref<8x32xf32, #tpu.memory_space<vmem>>, vector<8x32xf32>
    %1 = arith.truncf %0 : vector<8x32xf32> to vector<8x32xbf16>
    %c0_1 = arith.constant 0 : index
    %c0_2 = arith.constant 0 : index
    %2 = vector.load %arg2[%c0_1, %c0_2] : memref<32x32xbf16, #tpu.memory_space<vmem>>, vector<32x32xbf16>
    %cst = arith.constant dense<0.000000e+00> : vector<8x32xf32>
    %3 = tpu.matmul %1, %2, %cst {dimension_numbers = #tpu.dot_dimension_numbers<[1], [0], [0], [1], [0, 0, 1, 1], [], []>} : vector<8x32xbf16>, vector<32x32xbf16>, vector<8x32xf32> -> vector<8x32xf32>
    %c0_3 = arith.constant 0 : index
    %c0_4 = arith.constant 0 : index
    %4 = vector.load %arg3[%c0_3, %c0_4] : memref<3x32xf32, #tpu.memory_space<vmem>>, vector<3x32xf32>
    %5 = vector.extract_strided_slice %4 {offsets = [0, 0], sizes = [1, 32], strides = [1, 1]} : vector<3x32xf32> to vector<1x32xf32>
    %6 = vector.broadcast %5 : vector<1x32xf32> to vector<8x32xf32>
    %7 = arith.addf %3, %6 : vector<8x32xf32>
    %8 = vector.extract_strided_slice %4 {offsets = [1, 0], sizes = [1, 32], strides = [1, 1]} : vector<3x32xf32> to vector<1x32xf32>
    %9 = vector.extract_strided_slice %4 {offsets = [2, 0], sizes = [1, 32], strides = [1, 1]} : vector<3x32xf32> to vector<1x32xf32>
    %cst_5 = arith.constant 5.000000e-01 : f32
    %10 = vector.broadcast %cst_5 : f32 to vector<8x32xf32>
    %11 = arith.mulf %7, %10 : vector<8x32xf32>
    %cst_6 = arith.constant 0.707106769 : f32
    %12 = vector.broadcast %cst_6 : f32 to vector<8x32xf32>
    %13 = arith.mulf %7, %12 : vector<8x32xf32>
    %14 = math.erf %13 : vector<8x32xf32>
    %cst_7 = arith.constant 1.000000e+00 : f32
    %15 = vector.broadcast %cst_7 : f32 to vector<8x32xf32>
    %16 = arith.addf %15, %14 : vector<8x32xf32>
    %17 = arith.mulf %11, %16 : vector<8x32xf32>
    %cst_8 = arith.constant dense<0.000000e+00> : vector<8xf32>
    %18 = vector.multi_reduction <add>, %17, %cst_8 [1] : vector<8x32xf32> to vector<8xf32>
    %19 = vector.shape_cast %18 : vector<8xf32> to vector<8x1xf32>
    %cst_9 = arith.constant 3.125000e-02 : f32
    %20 = vector.broadcast %cst_9 : f32 to vector<8x1xf32>
    %21 = arith.mulf %19, %20 : vector<8x1xf32>
    %22 = vector.broadcast %21 : vector<8x1xf32> to vector<8x32xf32>
    %23 = arith.subf %17, %22 : vector<8x32xf32>
    %24 = arith.mulf %23, %23 : vector<8x32xf32>
    %cst_10 = arith.constant dense<0.000000e+00> : vector<8xf32>
    %25 = vector.multi_reduction <add>, %24, %cst_10 [1] : vector<8x32xf32> to vector<8xf32>
    %26 = vector.shape_cast %25 : vector<8xf32> to vector<8x1xf32>
    %cst_11 = arith.constant 3.125000e-02 : f32
    %27 = vector.broadcast %cst_11 : f32 to vector<8x1xf32>
    %28 = arith.mulf %26, %27 : vector<8x1xf32>
    %cst_12 = arith.constant 9.99999996E-13 : f32
    %29 = vector.broadcast %cst_12 : f32 to vector<8x1xf32>
    %30 = arith.addf %28, %29 : vector<8x1xf32>
    %31 = math.rsqrt %30 : vector<8x1xf32>
    %32 = vector.broadcast %31 : vector<8x1xf32> to vector<8x32xf32>
    %33 = arith.mulf %23, %32 : vector<8x32xf32>
    %34 = vector.broadcast %8 : vector<1x32xf32> to vector<8x32xf32>
    %35 = arith.mulf %34, %33 : vector<8x32xf32>
    %36 = vector.broadcast %9 : vector<1x32xf32> to vector<8x32xf32>
    %37 = arith.addf %35, %36 : vector<8x32xf32>
    %c0_13 = arith.constant 0 : index
    %c0_14 = arith.constant 0 : index
    %38 = vector.load %arg4[%c0_13, %c0_14] : memref<8x32xf32, #tpu.memory_space<vmem>>, vector<8x32xf32>
    tpu.vector_store %arg4[%c0_13, %c0_14], %37 {strides = array<i32>} : memref<8x32xf32, #tpu.memory_space<vmem>>, vector<8x32xf32>,
    return
  }
  func.func @transform_0(%arg0: i32) -> (i32, i32) {
    %c0_i32 = arith.constant 0 : i32
    %c0_i32_0 = arith.constant 0 : i32
    return %arg0, %c0_i32 : i32, i32
  }
  func.func @transform_1(%arg0: i32) -> (i32, i32) {
    %c0_i32 = arith.constant 0 : i32
    %c0_i32_0 = arith.constant 0 : i32
    %c0_i32_1 = arith.constant 0 : i32
    return %c0_i32, %c0_i32_0 : i32, i32
  }
  func.func @transform_2(%arg0: i32) -> (i32, i32) {
    %c0_i32 = arith.constant 0 : i32
    %c0_i32_0 = arith.constant 0 : i32
    %c0_i32_1 = arith.constant 0 : i32
    return %c0_i32, %c0_i32_0 : i32, i32
  }
  func.func @transform_3(%arg0: i32) -> (i32, i32) {
    %c0_i32 = arith.constant 0 : i32
    %c0_i32_0 = arith.constant 0 : i32
    return %arg0, %c0_i32 : i32, i32
  }
}

</mosaic_0001>

<llo_original>
// kernel: tpu_custom_call.1
$region0: #{tpu_custom_call.1}
  #allocation0 [shape = 'u32[]', space=smem, size = 0x4, offset = 0x4, fixed_abs, tag = 'smem constant byte address 0x4 - core index']
  #allocation1 [shape = 'u32[72,128]{1,0:T(1,128)}', space=vmem, size = 0x9000, scoped, tag = 'internal scratch']
  %s0 = inlined_call_operand.hbm [shape: f32[16,32], index: 0, kind: input, shape index: {}]
  %s1 = inlined_call_operand.hbm [shape: bf16[32,32], index: 1, kind: input, shape index: {}]
  %s2 = inlined_call_operand.hbm [shape: f32[3,32], index: 2, kind: input, shape index: {}]
  %s3 = inlined_call_operand.hbm [shape: f32[16,32], index: 3, kind: output, shape index: {}]
  %s4 = sld [smem:[#allocation0]]
  $region57: #{tpu_custom_call.1} parent=0
    _
  %s6 = ssub.s32 1, %s4
  %s7 = scalar_select 0, %s6, %s4
  $region1: #{tpu_custom_call.1} parent=0
    #allocation2 [shape = 'u8[8192]{0}', space=vmem, size = 0x2000, scoped, tag = 'input window, operand 0']
    #allocation3 [shape = 's32[2]{0}', space=sflag, size = 0x8, scoped, tag = 'scoped memory for tpu_custom_call.1']
    #allocation4 [shape = 's32[2]{0}', space=sflag, size = 0x8, scoped, tag = 'scoped memory for tpu_custom_call.1']
    #allocation5 [shape = 'u8[8192]{0}', space=vmem, size = 0x2000, scoped, tag = 'input window, operand 1, single buffered']
    #allocation6 [shape = 's32[1]{0}', space=sflag, size = 0x4, scoped, tag = 'scoped memory for tpu_custom_call.1']
    #allocation7 [shape = 'u8[2048]{0}', space=vmem, size = 0x800, scoped, tag = 'input window, operand 2, single buffered']
    #allocation8 [shape = 'u8[8192]{0}', space=vmem, size = 0x2000, scoped, tag = 'output window, operand 0']
    %8 = vsyncpa [#allocation3], 0
    %s9 = scalar_lea.sflag [#allocation3], 1
    %10 = vsyncpa %s9, 0
    %11 = vsyncpa [#allocation6], 0
    %12 = vsyncpa [#allocation4], 0
    %s13 = scalar_lea.sflag [#allocation4], 1
    %14 = vsyncpa %s13, 0
    loop: start=0, step=1, limit=4
    $region2: #{tpu_custom_call.1} parent=1 // loop_pre_header
      _
    $region3: #{tpu_custom_call.1} parent=1 // loop_header
      %s16 = sphi 0, %s20
      %p17 = scmp.ge.s32.totalorder %s16, 4
      %s26 = sphi 0, %s28
      %s29 = sphi 0, %s26
      %s30 = sphi 0, %s29
      %s46 = sphi 0, %s30
      %s50 = sphi 0, %s50
      %s52 = sphi 0, %s50
      %s53 = sphi 0, %s52
      %s67 = sphi 0, %s53
      %s71 = sphi 0, %s71
      %s73 = sphi 0, %s71
      %s74 = sphi 0, %s73
      %s88 = sphi 0, %s74
      %s94 = sphi 0, %s96
      %s97 = sphi 0, %s94
      %s98 = sphi 0, %s97
      %s114 = sphi 0, %s98
    $region4: #{tpu_custom_call.1} parent=1 // loop_header_branch
      %19 = sbr.rel (%p17) target = $region8
    $region5: #{tpu_custom_call.1} parent=1 // loop_body
      %s21 = ssub.s32 %s16, 1
      %s22 = ssub.s32 %s16, 2
      %s23 = sadd.s32 %s16, 1
      %s24 = ssub.s32 %s16, %s23
      %p25 = scmp.eq.s32.totalorder %s24, 0
      %s27 = sadd.s32 %s26, 1
      %s28 = scalar_select %p25, %s26, %s27
      %p31 = pneg %p25
      %p32 = scmp.eq.s32.totalorder %s16, 1
      %p33 = por %p31, %p32
      %p34 = scmp.ne.s32.totalorder %s26, %s29
      %p35 = scmp.eq.s32.totalorder %s16, 0
      %p36 = por %p34, %p35
      %p37 = scmp.ne.s32.totalorder %s26, %s29
      %p38 = scmp.eq.s32.totalorder %s21, 1
      %p39 = por %p37, %p38
      %p40 = scmp.ne.s32.totalorder %s29, %s30
      %p41 = scmp.eq.s32.totalorder %s21, 0
      %p42 = por %p40, %p41
      %p43 = scmp.ne.s32.totalorder %s29, %s30
      %p44 = scmp.eq.s32.totalorder %s22, 1
      %p45 = por %p43, %p44
      %p47 = scmp.ne.s32.totalorder %s30, %s46
      %p48 = scmp.eq.s32.totalorder %s22, 0
      %p49 = por %p47, %p48
      %s51 = sadd.s32 %s50, 1
      %p54 = scmp.eq.s32.totalorder %s16, 1
      %p55 = scmp.ne.s32.totalorder %s50, %s52
      %p56 = scmp.eq.s32.totalorder %s16, 0
      %p57 = por %p55, %p56
      %p58 = scmp.ne.s32.totalorder %s50, %s52
      %p59 = scmp.eq.s32.totalorder %s21, 1
      %p60 = por %p58, %p59
      %p61 = scmp.ne.s32.totalorder %s52, %s53
      %p62 = scmp.eq.s32.totalorder %s21, 0
      %p63 = por %p61, %p62
      %p64 = scmp.ne.s32.totalorder %s52, %s53
      %p65 = scmp.eq.s32.totalorder %s22, 1
      %p66 = por %p64, %p65
      %p68 = scmp.ne.s32.totalorder %s53, %s67
      %p69 = scmp.eq.s32.totalorder %s22, 0
      %p70 = por %p68, %p69
      %s72 = sadd.s32 %s71, 1
      %p75 = scmp.eq.s32.totalorder %s16, 1
      %p76 = scmp.ne.s32.totalorder %s71, %s73
      %p77 = scmp.eq.s32.totalorder %s16, 0
      %p78 = por %p76, %p77
      %p79 = scmp.ne.s32.totalorder %s71, %s73
      %p80 = scmp.eq.s32.totalorder %s21, 1
      %p81 = por %p79, %p80
      %p82 = scmp.ne.s32.totalorder %s73, %s74
      %p83 = scmp.eq.s32.totalorder %s21, 0
      %p84 = por %p82, %p83
      %p85 = scmp.ne.s32.totalorder %s73, %s74
      %p86 = scmp.eq.s32.totalorder %s22, 1
      %p87 = por %p85, %p86
      %p89 = scmp.ne.s32.totalorder %s74, %s88
      %p90 = scmp.eq.s32.totalorder %s22, 0
      %p91 = por %p89, %p90
      %s92 = ssub.s32 %s16, %s23
      %p93 = scmp.eq.s32.totalorder %s92, 0
      %s95 = sadd.s32 %s94, 1
      %s96 = scalar_select %p93, %s94, %s95
      %p99 = pneg %p93
      %p100 = scmp.eq.s32.totalorder %s16, 1
      %p101 = por %p99, %p100
      %p102 = scmp.ne.s32.totalorder %s94, %s97
      %p103 = scmp.eq.s32.totalorder %s16, 0
      %p104 = por %p102, %p103
      %p105 = scmp.ne.s32.totalorder %s94, %s97
      %p106 = scmp.eq.s32.totalorder %s21, 1
      %p107 = por %p105, %p106
      %p108 = scmp.ne.s32.totalorder %s97, %s98
      %p109 = scmp.eq.s32.totalorder %s21, 0
      %p110 = por %p108, %p109
      %p111 = scmp.ne.s32.totalorder %s97, %s98
      %p112 = scmp.eq.s32.totalorder %s22, 1
      %p113 = por %p111, %p112
      %p115 = scmp.ne.s32.totalorder %s98, %s114
      %p116 = scmp.eq.s32.totalorder %s22, 0
      %p117 = por %p115, %p116
      %p118 = scmp.le.s32.totalorder 1, %s16
      %p119 = scmp.lt.s32.totalorder %s16, 3
      %p120 = pnand %p118, %p119
      %p121 = pneg %p120
      // Predicated region
      $region9: #{tpu_custom_call.1} parent=5 // pred_check
        _
      $region10: #{tpu_custom_call.1} parent=5 // pred_check_branch
        %123 = sbr.rel (%p120) target = $region12
      $region11: #{tpu_custom_call.1} parent=5 // pred_region
        %s124 = ssub.s32 %s16, 1
        // Predicated region
        $region13: #{tpu_custom_call.1} parent=11 // pred_check
          %p125 = pneg %p63
        $region14: #{tpu_custom_call.1} parent=11 // pred_check_branch
          %127 = sbr.rel (%p125) target = $region16
        $region15: #{tpu_custom_call.1} parent=11 // pred_region
          %129 = vsyncadd [#allocation6], 0
          %s130 = sshll.u32 %s1, 4
          %s131 = int_to_ptr.hbm [resolvable:$true] %s130
          %s132 = sshll.u32 [#allocation5], 4
          %s133 = int_to_ptr.vmem [resolvable:$true] %s132
          %138 = dma.hbm_to_vmem [thread:$0]  %s131, 256, %s133, [#allocation6], 64, 64, 4
        $region16: #{tpu_custom_call.1} parent=11 // pred_fallthru
          _
        // Predicated region
        $region17: #{tpu_custom_call.1} parent=11 // pred_check
          %p139 = pneg %p84
        $region18: #{tpu_custom_call.1} parent=11 // pred_check_branch
          %141 = sbr.rel (%p139) target = $region20
        $region19: #{tpu_custom_call.1} parent=11 // pred_region
          %143 = vsyncadd [#allocation6], 0
          %s145 = sshll.u32 %s2, 4
          %s146 = int_to_ptr.hbm [resolvable:$true] %s145
          %s147 = sshll.u32 [#allocation7], 4
          %s148 = int_to_ptr.vmem [resolvable:$true] %s147
          %150 = dma.hbm_to_vmem [thread:$0]  %s146, 64, %s148, [#allocation6]
        $region20: #{tpu_custom_call.1} parent=11 // pred_fallthru
          _
      $region12: #{tpu_custom_call.1} parent=5 // pred_fallthru
        _
      %p151 = scmp.lt.s32.totalorder %s16, 2
      // Predicated region
      $region21: #{tpu_custom_call.1} parent=5 // pred_check
        %p152 = pneg %p151
      $region22: #{tpu_custom_call.1} parent=5 // pred_check_branch
        %154 = sbr.rel (%p152) target = $region24
      $region23: #{tpu_custom_call.1} parent=5 // pred_region
        // Predicated region
        $region25: #{tpu_custom_call.1} parent=23 // pred_check
          %p155 = pneg %p36
        $region26: #{tpu_custom_call.1} parent=23 // pred_check_branch
          %157 = sbr.rel (%p155) target = $region28
        $region27: #{tpu_custom_call.1} parent=23 // pred_region
          %s158 = sand.u32 %s26, 1
          %s159 = scalar_lea.sflag [#allocation3], %s158
          %s160 = sand.u32 %s26, 1
          %s161 = smul.addr %s160, 8
          %s162 = scalar_lea.vmem [#allocation2], %s161
          %164 = vsyncadd %s159, 0
          %s165 = smul.addr %s16, 8
          %s166 = scalar_lea.hbm %s0, %s165
          %s168 = sshll.u32 %s166, 4
          %s169 = int_to_ptr.hbm [resolvable:$true] %s168
          %s170 = sshll.u32 %s162, 4
          %s171 = int_to_ptr.vmem [resolvable:$true] %s170
          %173 = dma.hbm_to_vmem [thread:$0]  %s169, 128, %s171, %s159
        $region28: #{tpu_custom_call.1} parent=23 // pred_fallthru
          _
      $region24: #{tpu_custom_call.1} parent=5 // pred_fallthru
        _
      %p174 = scmp.le.s32.totalorder 1, %s16
      %p175 = scmp.lt.s32.totalorder %s16, 3
      %p176 = pnand %p174, %p175
      %p177 = pneg %p176
      // Predicated region
      $region29: #{tpu_custom_call.1} parent=5 // pred_check
        _
      $region30: #{tpu_custom_call.1} parent=5 // pred_check_branch
        %179 = sbr.rel (%p176) target = $region32
      $region31: #{tpu_custom_call.1} parent=5 // pred_region
        %s180 = ssub.s32 %s16, 1
        %s181 = sand.u32 %s29, 1
        %s182 = scalar_lea.sflag [#allocation3], %s181
        %s183 = sand.u32 %s29, 1
        %s184 = smul.addr %s183, 8
        %s185 = scalar_lea.vmem [#allocation2], %s184
        // Predicated region
        $region33: #{tpu_custom_call.1} parent=31 // pred_check
          %p186 = pneg %p42
        $region34: #{tpu_custom_call.1} parent=31 // pred_check_branch
          %188 = sbr.rel (%p186) target = $region36
        $region35: #{tpu_custom_call.1} parent=31 // pred_region
          %190 = dma.done %s182, 128
        $region36: #{tpu_custom_call.1} parent=31 // pred_fallthru
          _
        // Predicated region
        $region37: #{tpu_custom_call.1} parent=31 // pred_check
          %p191 = pneg %p63
        $region38: #{tpu_custom_call.1} parent=31 // pred_check_branch
          %193 = sbr.rel (%p191) target = $region40
        $region39: #{tpu_custom_call.1} parent=31 // pred_region
          %195 = dma.done [#allocation6], 256
        $region40: #{tpu_custom_call.1} parent=31 // pred_fallthru
          _
        // Predicated region
        $region41: #{tpu_custom_call.1} parent=31 // pred_check
          %p196 = pneg %p84
        $region42: #{tpu_custom_call.1} parent=31 // pred_check_branch
          %198 = sbr.rel (%p196) target = $region44
        $region43: #{tpu_custom_call.1} parent=31 // pred_region
          %200 = dma.done [#allocation6], 64
        $region44: #{tpu_custom_call.1} parent=31 // pred_fallthru
          _
        %s201 = sand.u32 %s29, 1
        %s202 = scalar_lea.sflag [#allocation3], %s201
        %s203 = sand.u32 %s29, 1
        %s204 = smul.addr %s203, 8
        %s205 = scalar_lea.vmem [#allocation2], %s204
        %p206 = pneg %p42
        %p207 = pneg %p39
        %p208 = pneg %p63
        %p209 = pneg %p60
        %p210 = pneg %p84
        %p211 = pneg %p81
        %p212 = pneg %p110
        %p213 = pneg %p107
        %s214 = sand.u32 %s97, 1
        %s215 = scalar_lea.sflag [#allocation4], %s214
        %s216 = sand.u32 %s97, 1
        %s217 = smul.addr %s216, 8
        %s218 = scalar_lea.vmem [#allocation8], %s217
        %v220 = vld [vmem:[%s185] sm:$0xff]
        %v221 = vpack.c.bf16 %v220, %v220
        %v222 = vld [vmem:[#allocation5] sm:$0xf]
        %v223 = vld [vmem:[#allocation5 + $0x4] sm:$0xf]
        %v224 = vld [vmem:[#allocation5 + $0x8] sm:$0xf]
        %v225 = vld [vmem:[#allocation5 + $0xc] sm:$0xf]
        %v226 = vld [vmem:[#allocation7] sm:$0x7]
        %v227 = vperm.slane %v226, 0
        %v232 = vunpack.c.l.b16 %v222
        %v233 = vunpack.c.l.b16 %v223
        %v234 = vunpack.c.l.b16 %v224
        %v235 = vunpack.c.l.b16 %v225
        %v236 = vpack.c.b16 %v233, %v232
        %v237 = vpack.c.b16 %v235, %v234
        %vm240 = vcmask 261120
        %v242 = vsel %vm240, %v221, 0
        %244 = vmatpush.bf16.msra.mxu0 0
        %245 = vmatpush.bf16.msra.mxu0 0
        %246 = vmatpush.bf16.msra.mxu0 0
        %247 = vmatpush.bf16.msra.mxu0 0
        %248 = vmatpush.bf16.msra.mxu0 0
        %249 = vmatpush.bf16.msra.mxu0 0
        %250 = vmatpush.bf16.msra.mxu0 %v237
        %251 = vmatpush.bf16.msra.mxu0 %v236
        %252 = vmatmul.bf16.gmra.mxu0 %v242
        %v253 = vpop.f32.mrf.mxu0
        %v254 = vadd.f32 %v227, %v253
        %v255 = vpop.f32.mrf.mxu0
        %256 = vdwg.mxu0
        %v257 = vmul.f32 %v254, 0.5
        %v258 = vmul.f32 %v254, 0.70710677
        %v259 = vmul.f32 %v258, %v258
        %v260 = vmin.f32 16.0, %v259
        %v261 = vmul.f32 %v260, 2.1237322e-06
        %v262 = vadd.f32 %v261, 0.00028619796
        %v263 = vmul.f32 %v260, %v262
        %v264 = vadd.f32 %v263, 0.0036580483
        %v265 = vmul.f32 %v260, %v264
        %v266 = vadd.f32 %v265, 0.05243302
        %v267 = vmul.f32 %v260, %v266
        %v268 = vadd.f32 %v267, 0.18741608
        %v269 = vmul.f32 %v260, %v268
        %v270 = vadd.f32 %v269, 1.1283791
        %v271 = vmul.f32 %v258, %v270
        %v272 = vmul.f32 %v260, 3.8918573e-05
        %v273 = vadd.f32 %v272, 0.001143296
        %v274 = vmul.f32 %v260, %v273
        %v275 = vadd.f32 %v274, 0.014752088
        %v276 = vmul.f32 %v260, %v275
        %v277 = vadd.f32 %v276, 0.112945676
        %v278 = vmul.f32 %v260, %v277
        %v279 = vadd.f32 %v278, 0.4994258
        %v280 = vmul.f32 %v260, %v279
        %v281 = vadd.f32 %v280, 1.0
        %v282 = vrcp.pop %v281
        %v283 = vmul.f32 %v281, %v282
        %v284 = vsub.f32 1.0, %v283
        %v285 = vmul.f32 %v282, %v284
        %v286 = vadd.f32 %v282, %v285
        %vm287 = vweird.f32 %v281
        %vm288 = vweird.f32 %v282
        %vm289 = vmor %vm287, %vm288
        %v290 = vsel %vm289, %v282, %v286
        %v291 = vand.u32 2147483647, %v281
        %vm292 = vcmp.eq.f32.partialorder %v291, 8.507059e+37
        %v293 = vand.u32 %v281, 2147483648
        %v294 = vor.u32 1.1754944e-38, %v293
        %v295 = vsel %vm292, %v294, %v290
        %v296 = vmul.f32 %v271, %v295
        %v297 = vmin.f32 %v296, 1.0
        %v298 = vmax.f32 %v297, -1.0
        %v299 = vadd.f32 %v298, 1.0
        %v300 = vmul.f32 %v257, %v299
        %v301 = vsel %vm240, %v300, 0.0
        %302 = vadd.xlane.f32.xlu0 %v301
        %v303 = vpop.xlane.xlu0 %302
        %v304 = vmul.f32 %v303, 0.03125
        %v305 = vsub.f32 %v300, %v304
        %v306 = vmul.f32 %v305, %v305
        %v307 = vsel %vm240, %v306, 0.0
        %308 = vadd.xlane.f32.xlu0 %v307
        %v309 = vpop.xlane.xlu0 %308
        %v310 = vmul.f32 %v309, 0.03125
        %v311 = vadd.f32 %v310, 1e-12
        %v312 = vrsqrt.pop %v311
        %v313 = vmul.f32 %v312, %v311
        %v314 = vmul.f32 %v313, %v312
        %v315 = vmul.f32 0.5, %v314
        %v316 = vsub.f32 1.5, %v315
        %v317 = vmul.f32 %v312, %v316
        %vm318 = vweird.f32 %v311
        %vm319 = vweird.f32 %v312
        %vm320 = vmor %vm318, %vm319
        %v321 = vsel %vm320, %v312, %v317
        %v322 = vmul.f32 %v305, %v321
        %v323 = vperm.slane %v226, 1
        %v324 = vmul.f32 %v323, %v322
        %v325 = vperm.slane %v226, 2
        %v326 = vadd.f32 %v324, %v325
        %327 = vst.msk [vmem:[%s218] sm:$0xff] %vm240, %v326
        %s328 = sand.u32 %s97, 1
        %s329 = scalar_lea.sflag [#allocation4], %s328
        %s330 = sand.u32 %s97, 1
        %s331 = smul.addr %s330, 8
        %s332 = scalar_lea.vmem [#allocation8], %s331
        // Predicated region
        $region45: #{tpu_custom_call.1} parent=31 // pred_check
          %p333 = pneg %p107
        $region46: #{tpu_custom_call.1} parent=31 // pred_check_branch
          %335 = sbr.rel (%p333) target = $region48
        $region47: #{tpu_custom_call.1} parent=31 // pred_region
          %337 = vsyncadd %s329, 0
          %s338 = smul.addr %s21, 8
          %s339 = scalar_lea.hbm %s3, %s338
          %s341 = sshll.u32 %s332, 4
          %s342 = int_to_ptr.vmem [resolvable:$true] %s341
          %s343 = sshll.u32 %s339, 4
          %s344 = int_to_ptr.hbm [resolvable:$true] %s343
          %346 = dma.vmem_to_hbm [thread:$0]  %s342, 128, %s344, %s329
        $region48: #{tpu_custom_call.1} parent=31 // pred_fallthru
          _
      $region32: #{tpu_custom_call.1} parent=5 // pred_fallthru
        _
      %p347 = scmp.le.s32.totalorder 2, %s16
      // Predicated region
      $region49: #{tpu_custom_call.1} parent=5 // pred_check
        %p348 = pneg %p347
      $region50: #{tpu_custom_call.1} parent=5 // pred_check_branch
        %350 = sbr.rel (%p348) target = $region52
      $region51: #{tpu_custom_call.1} parent=5 // pred_region
        %s351 = ssub.s32 %s16, 2
        // Predicated region
        $region53: #{tpu_custom_call.1} parent=51 // pred_check
          %p352 = pneg %p113
        $region54: #{tpu_custom_call.1} parent=51 // pred_check_branch
          %354 = sbr.rel (%p352) target = $region56
        $region55: #{tpu_custom_call.1} parent=51 // pred_region
          %s355 = sand.u32 %s98, 1
          %s356 = scalar_lea.sflag [#allocation4], %s355
          %s357 = sand.u32 %s98, 1
          %s358 = smul.addr %s357, 8
          %s359 = scalar_lea.vmem [#allocation8], %s358
          %361 = dma.done %s356, 128
        $region56: #{tpu_custom_call.1} parent=51 // pred_fallthru
          _
      $region52: #{tpu_custom_call.1} parent=5 // pred_fallthru
        _
    $region6: #{tpu_custom_call.1} parent=1 // loop_footer
      %s20 = sadd.s32 1, %s16
    $region7: #{tpu_custom_call.1} parent=1 // loop_footer_branch
      %15 = sbr.rel target = $region3
    $region8: #{tpu_custom_call.1} parent=1 // loop_exit
      _
    %362 = vsyncpa [#allocation3], 1
    %s363 = scalar_lea.sflag [#allocation3], 1
    %364 = vsyncpa %s363, 1
    %365 = vsyncpa [#allocation6], 1
    %366 = vsyncpa [#allocation4], 1
    %s367 = scalar_lea.sflag [#allocation4], 1
    %368 = vsyncpa %s367, 1

// kernel: tpu_custom_call.1
$region0: #{tpu_custom_call.1}
  #allocation0 [shape = 'u32[]', space=smem, size = 0x4, offset = 0x4, fixed_abs, tag = 'smem constant byte address 0x4 - core index']
  #allocation1 [shape = 'u32[72,128]{1,0:T(1,128)}', space=vmem, size = 0x9000, scoped, tag = 'internal scratch']
  %s0 = inlined_call_operand.hbm [shape: f32[16,32], index: 0, kind: input, shape index: {}]
  %s1 = inlined_call_operand.hbm [shape: bf16[32,32], index: 1, kind: input, shape index: {}]
  %s2 = inlined_call_operand.hbm [shape: f32[3,32], index: 2, kind: input, shape index: {}]
  %s3 = inlined_call_operand.hbm [shape: f32[16,32], index: 3, kind: output, shape index: {}]
  %s4 = sld [smem:[#allocation0]]
  $region57: #{tpu_custom_call.1} parent=0
    _
  %s6 = ssub.s32 1, %s4
  %s7 = scalar_select 0, %s6, %s4
  $region1: #{tpu_custom_call.1} parent=0
    #allocation2 [shape = 'u8[8192]{0}', space=vmem, size = 0x2000, scoped, tag = 'input window, operand 0']
    #allocation3 [shape = 's32[2]{0}', space=sflag, size = 0x8, scoped, tag = 'scoped memory for tpu_custom_call.1']
    #allocation4 [shape = 's32[2]{0}', space=sflag, size = 0x8, scoped, tag = 'scoped memory for tpu_custom_call.1']
    #allocation5 [shape = 'u8[8192]{0}', space=vmem, size = 0x2000, scoped, tag = 'input window, operand 1, single buffered']
    #allocation6 [shape = 's32[1]{0}', space=sflag, size = 0x4, scoped, tag = 'scoped memory for tpu_custom_call.1']
    #allocation7 [shape = 'u8[2048]{0}', space=vmem, size = 0x800, scoped, tag = 'input window, operand 2, single buffered']
    #allocation8 [shape = 'u8[8192]{0}', space=vmem, size = 0x2000, scoped, tag = 'output window, operand 0']
    %8 = vsyncpa [#allocation3], 0
    %s9 = scalar_lea.sflag [#allocation3], 1
    %10 = vsyncpa %s9, 0
    %11 = vsyncpa [#allocation6], 0
    %12 = vsyncpa [#allocation4], 0
    %s13 = scalar_lea.sflag [#allocation4], 1
    %14 = vsyncpa %s13, 0
    loop: start=0, step=1, limit=4
    $region2: #{tpu_custom_call.1} parent=1 // loop_pre_header
      _
    $region3: #{tpu_custom_call.1} parent=1 // loop_header
      %s16 = sphi 0, %s20
      %p17 = scmp.ge.s32.totalorder %s16, 4
      %s26 = sphi 0, %s28
      %s29 = sphi 0, %s26
      %s30 = sphi 0, %s29
      %s46 = sphi 0, %s30
      %s50 = sphi 0, %s50
      %s52 = sphi 0, %s50
      %s53 = sphi 0, %s52
      %s67 = sphi 0, %s53
      %s71 = sphi 0, %s71
      %s73 = sphi 0, %s71
      %s74 = sphi 0, %s73
      %s88 = sphi 0, %s74
      %s94 = sphi 0, %s96
      %s97 = sphi 0, %s94
      %s98 = sphi 0, %s97
      %s114 = sphi 0, %s98
    $region4: #{tpu_custom_call.1} parent=1 // loop_header_branch
      %19 = sbr.rel (%p17) target = $region8
    $region5: #{tpu_custom_call.1} parent=1 // loop_body
      %s21 = ssub.s32 %s16, 1
      %s22 = ssub.s32 %s16, 2
      %s23 = sadd.s32 %s16, 1
      %s24 = ssub.s32 %s16, %s23
      %p25 = scmp.eq.s32.totalorder %s24, 0
      %s27 = sadd.s32 %s26, 1
      %s28 = scalar_select %p25, %s26, %s27
      %p31 = pneg %p25
      %p32 = scmp.eq.s32.totalorder %s16, 1
      %p33 = por %p31, %p32
      %p34 = scmp.ne.s32.totalorder %s26, %s29
      %p35 = scmp.eq.s32.totalorder %s16, 0
      %p36 = por %p34, %p35
      %p37 = scmp.ne.s32.totalorder %s26, %s29
      %p38 = scmp.eq.s32.totalorder %s21, 1
      %p39 = por %p37, %p38
      %p40 = scmp.ne.s32.totalorder %s29, %s30
      %p41 = scmp.eq.s32.totalorder %s21, 0
      %p42 = por %p40, %p41
      %p43 = scmp.ne.s32.totalorder %s29, %s30
      %p44 = scmp.eq.s32.totalorder %s22, 1
      %p45 = por %p43, %p44
      %p47 = scmp.ne.s32.totalorder %s30, %s46
      %p48 = scmp.eq.s32.totalorder %s22, 0
      %p49 = por %p47, %p48
      %s51 = sadd.s32 %s50, 1
      %p54 = scmp.eq.s32.totalorder %s16, 1
      %p55 = scmp.ne.s32.totalorder %s50, %s52
      %p56 = scmp.eq.s32.totalorder %s16, 0
      %p57 = por %p55, %p56
      %p58 = scmp.ne.s32.totalorder %s50, %s52
      %p59 = scmp.eq.s32.totalorder %s21, 1
      %p60 = por %p58, %p59
      %p61 = scmp.ne.s32.totalorder %s52, %s53
      %p62 = scmp.eq.s32.totalorder %s21, 0
      %p63 = por %p61, %p62
      %p64 = scmp.ne.s32.totalorder %s52, %s53
      %p65 = scmp.eq.s32.totalorder %s22, 1
      %p66 = por %p64, %p65
      %p68 = scmp.ne.s32.totalorder %s53, %s67
      %p69 = scmp.eq.s32.totalorder %s22, 0
      %p70 = por %p68, %p69
      %s72 = sadd.s32 %s71, 1
      %p75 = scmp.eq.s32.totalorder %s16, 1
      %p76 = scmp.ne.s32.totalorder %s71, %s73
      %p77 = scmp.eq.s32.totalorder %s16, 0
      %p78 = por %p76, %p77
      %p79 = scmp.ne.s32.totalorder %s71, %s73
      %p80 = scmp.eq.s32.totalorder %s21, 1
      %p81 = por %p79, %p80
      %p82 = scmp.ne.s32.totalorder %s73, %s74
      %p83 = scmp.eq.s32.totalorder %s21, 0
      %p84 = por %p82, %p83
      %p85 = scmp.ne.s32.totalorder %s73, %s74
      %p86 = scmp.eq.s32.totalorder %s22, 1
      %p87 = por %p85, %p86
      %p89 = scmp.ne.s32.totalorder %s74, %s88
      %p90 = scmp.eq.s32.totalorder %s22, 0
      %p91 = por %p89, %p90
      %s92 = ssub.s32 %s16, %s23
      %p93 = scmp.eq.s32.totalorder %s92, 0
      %s95 = sadd.s32 %s94, 1
      %s96 = scalar_select %p93, %s94, %s95
      %p99 = pneg %p93
      %p100 = scmp.eq.s32.totalorder %s16, 1
      %p101 = por %p99, %p100
      %p102 = scmp.ne.s32.totalorder %s94, %s97
      %p103 = scmp.eq.s32.totalorder %s16, 0
      %p104 = por %p102, %p103
      %p105 = scmp.ne.s32.totalorder %s94, %s97
      %p106 = scmp.eq.s32.totalorder %s21, 1
      %p107 = por %p105, %p106
      %p108 = scmp.ne.s32.totalorder %s97, %s98
      %p109 = scmp.eq.s32.totalorder %s21, 0
      %p110 = por %p108, %p109
      %p111 = scmp.ne.s32.totalorder %s97, %s98
      %p112 = scmp.eq.s32.totalorder %s22, 1
      %p113 = por %p111, %p112
      %p115 = scmp.ne.s32.totalorder %s98, %s114
      %p116 = scmp.eq.s32.totalorder %s22, 0
      %p117 = por %p115, %p116
      %p118 = scmp.le.s32.totalorder 1, %s16
      %p119 = scmp.lt.s32.totalorder %s16, 3
      %p120 = pnand %p118, %p119
      %p121 = pneg %p120
      // Predicated region
      $region9: #{tpu_custom_call.1} parent=5 // pred_check
        _
      $region10: #{tpu_custom_call.1} parent=5 // pred_check_branch
        %123 = sbr.rel (%p120) target = $region12
      $region11: #{tpu_custom_call.1} parent=5 // pred_region
        %s124 = ssub.s32 %s16, 1
        // Predicated region
        $region13: #{tpu_custom_call.1} parent=11 // pred_check
          %p125 = pneg %p63
        $region14: #{tpu_custom_call.1} parent=11 // pred_check_branch
          %127 = sbr.rel (%p125) target = $region16
        $region15: #{tpu_custom_call.1} parent=11 // pred_region
          %129 = vsyncadd [#allocation6], 0
          %s130 = sshll.u32 %s1, 4
          %s131 = int_to_ptr.hbm [resolvable:$true] %s130
          %s132 = sshll.u32 [#allocation5], 4
          %s133 = int_to_ptr.vmem [resolvable:$true] %s132
          %138 = dma.hbm_to_vmem [thread:$0]  %s131, 256, %s133, [#allocation6], 64, 64, 4
        $region16: #{tpu_custom_call.1} parent=11 // pred_fallthru
          _
        // Predicated region
        $region17: #{tpu_custom_call.1} parent=11 // pred_check
          %p139 = pneg %p84
        $region18: #{tpu_custom_call.1} parent=11 // pred_check_branch
          %141 = sbr.rel (%p139) target = $region20
        $region19: #{tpu_custom_call.1} parent=11 // pred_region
          %143 = vsyncadd [#allocation6], 0
          %s145 = sshll.u32 %s2, 4
          %s146 = int_to_ptr.hbm [resolvable:$true] %s145
          %s147 = sshll.u32 [#allocation7], 4
          %s148 = int_to_ptr.vmem [resolvable:$true] %s147
          %150 = dma.hbm_to_vmem [thread:$0]  %s146, 64, %s148, [#allocation6]
        $region20: #{tpu_custom_call.1} parent=11 // pred_fallthru
          _
      $region12: #{tpu_custom_call.1} parent=5 // pred_fallthru
        _
      %p151 = scmp.lt.s32.totalorder %s16, 2
      // Predicated region
      $region21: #{tpu_custom_call.1} parent=5 // pred_check
        %p152 = pneg %p151
      $region22: #{tpu_custom_call.1} parent=5 // pred_check_branch
        %154 = sbr.rel (%p152) target = $region24
      $region23: #{tpu_custom_call.1} parent=5 // pred_region
        // Predicated region
        $region25: #{tpu_custom_call.1} parent=23 // pred_check
          %p155 = pneg %p36
        $region26: #{tpu_custom_call.1} parent=23 // pred_check_branch
          %157 = sbr.rel (%p155) target = $region28
        $region27: #{tpu_custom_call.1} parent=23 // pred_region
          %s158 = sand.u32 %s26, 1
          %s159 = scalar_lea.sflag [#allocation3], %s158
          %s160 = sand.u32 %s26, 1
          %s161 = smul.addr %s160, 8
          %s162 = scalar_lea.vmem [#allocation2], %s161
          %164 = vsyncadd %s159, 0
          %s165 = smul.addr %s16, 8
          %s166 = scalar_lea.hbm %s0, %s165
          %s168 = sshll.u32 %s166, 4
          %s169 = int_to_ptr.hbm [resolvable:$true] %s168
          %s170 = sshll.u32 %s162, 4
          %s171 = int_to_ptr.vmem [resolvable:$true] %s170
          %173 = dma.hbm_to_vmem [thread:$0]  %s169, 128, %s171, %s159
        $region28: #{tpu_custom_call.1} parent=23 // pred_fallthru
          _
      $region24: #{tpu_custom_call.1} parent=5 // pred_fallthru
        _
      %p174 = scmp.le.s32.totalorder 1, %s16
      %p175 = scmp.lt.s32.totalorder %s16, 3
      %p176 = pnand %p174, %p175
      %p177 = pneg %p176
      // Predicated region
      $region29: #{tpu_custom_call.1} parent=5 // pred_check
        _
      $region30: #{tpu_custom_call.1} parent=5 // pred_check_branch
        %179 = sbr.rel (%p176) target = $region32
      $region31: #{tpu_custom_call.1} parent=5 // pred_region
        %s180 = ssub.s32 %s16, 1
        %s181 = sand.u32 %s29, 1
        %s182 = scalar_lea.sflag [#allocation3], %s181
        %s183 = sand.u32 %s29, 1
        %s184 = smul.addr %s183, 8
        %s185 = scalar_lea.vmem [#allocation2], %s184
        // Predicated region
        $region33: #{tpu_custom_call.1} parent=31 // pred_check
          %p186 = pneg %p42
        $region34: #{tpu_custom_call.1} parent=31 // pred_check_branch
          %188 = sbr.rel (%p186) target = $region36
        $region35: #{tpu_custom_call.1} parent=31 // pred_region
          %190 = dma.done %s182, 128
        $region36: #{tpu_custom_call.1} parent=31 // pred_fallthru
          _
        // Predicated region
        $region37: #{tpu_custom_call.1} parent=31 // pred_check
          %p191 = pneg %p63
        $region38: #{tpu_custom_call.1} parent=31 // pred_check_branch
          %193 = sbr.rel (%p191) target = $region40
        $region39: #{tpu_custom_call.1} parent=31 // pred_region
          %195 = dma.done [#allocation6], 256
        $region40: #{tpu_custom_call.1} parent=31 // pred_fallthru
          _
        // Predicated region
        $region41: #{tpu_custom_call.1} parent=31 // pred_check
          %p196 = pneg %p84
        $region42: #{tpu_custom_call.1} parent=31 // pred_check_branch
          %198 = sbr.rel (%p196) target = $region44
        $region43: #{tpu_custom_call.1} parent=31 // pred_region
          %200 = dma.done [#allocation6], 64
        $region44: #{tpu_custom_call.1} parent=31 // pred_fallthru
          _
        %s201 = sand.u32 %s29, 1
        %s202 = scalar_lea.sflag [#allocation3], %s201
        %s203 = sand.u32 %s29, 1
        %s204 = smul.addr %s203, 8
        %s205 = scalar_lea.vmem [#allocation2], %s204
        %p206 = pneg %p42
        %p207 = pneg %p39
        %p208 = pneg %p63
        %p209 = pneg %p60
        %p210 = pneg %p84
        %p211 = pneg %p81
        %p212 = pneg %p110
        %p213 = pneg %p107
        %s214 = sand.u32 %s97, 1
        %s215 = scalar_lea.sflag [#allocation4], %s214
        %s216 = sand.u32 %s97, 1
        %s217 = smul.addr %s216, 8
        %s218 = scalar_lea.vmem [#allocation8], %s217
        %v220 = vld [vmem:[%s185] sm:$0xff]
        %v221 = vpack.c.bf16 %v220, %v220
        %v222 = vld [vmem:[#allocation5] sm:$0xf]
        %v223 = vld [vmem:[#allocation5 + $0x4] sm:$0xf]
        %v224 = vld [vmem:[#allocation5 + $0x8] sm:$0xf]
        %v225 = vld [vmem:[#allocation5 + $0xc] sm:$0xf]
        %v226 = vld [vmem:[#allocation7] sm:$0x7]
        %v227 = vperm.slane %v226, 0
        %v232 = vunpack.c.l.b16 %v222
        %v233 = vunpack.c.l.b16 %v223
        %v234 = vunpack.c.l.b16 %v224
        %v235 = vunpack.c.l.b16 %v225
        %v236 = vpack.c.b16 %v233, %v232
        %v237 = vpack.c.b16 %v235, %v234
        %vm240 = vcmask 261120
        %v242 = vsel %vm240, %v221, 0
        %244 = vmatpush.bf16.msra.mxu0 0
        %245 = vmatpush.bf16.msra.mxu0 0
        %246 = vmatpush.bf16.msra.mxu0 0
        %247 = vmatpush.bf16.msra.mxu0 0
        %248 = vmatpush.bf16.msra.mxu0 0
        %249 = vmatpush.bf16.msra.mxu0 0
        %250 = vmatpush.bf16.msra.mxu0 %v237
        %251 = vmatpush.bf16.msra.mxu0 %v236
        %252 = vmatmul.bf16.gmra.mxu0 %v242
        %v253 = vpop.f32.mrf.mxu0
        %v254 = vadd.f32 %v227, %v253
        %v255 = vpop.f32.mrf.mxu0
        %256 = vdwg.mxu0
        %v257 = vmul.f32 %v254, 0.5
        %v258 = vmul.f32 %v254, 0.70710677
        %v259 = vmul.f32 %v258, %v258
        %v260 = vmin.f32 16.0, %v259
        %v261 = vmul.f32 %v260, 2.1237322e-06
        %v262 = vadd.f32 %v261, 0.00028619796
        %v263 = vmul.f32 %v260, %v262
        %v264 = vadd.f32 %v263, 0.0036580483
        %v265 = vmul.f32 %v260, %v264
        %v266 = vadd.f32 %v265, 0.05243302
        %v267 = vmul.f32 %v260, %v266
        %v268 = vadd.f32 %v267, 0.18741608
        %v269 = vmul.f32 %v260, %v268
        %v270 = vadd.f32 %v269, 1.1283791
        %v271 = vmul.f32 %v258, %v270
        %v272 = vmul.f32 %v260, 3.8918573e-05
        %v273 = vadd.f32 %v272, 0.001143296
        %v274 = vmul.f32 %v260, %v273
        %v275 = vadd.f32 %v274, 0.014752088
        %v276 = vmul.f32 %v260, %v275
        %v277 = vadd.f32 %v276, 0.112945676
        %v278 = vmul.f32 %v260, %v277
        %v279 = vadd.f32 %v278, 0.4994258
        %v280 = vmul.f32 %v260, %v279
        %v281 = vadd.f32 %v280, 1.0
        %v282 = vrcp.pop %v281
        %v283 = vmul.f32 %v281, %v282
        %v284 = vsub.f32 1.0, %v283
        %v285 = vmul.f32 %v282, %v284
        %v286 = vadd.f32 %v282, %v285
        %vm287 = vweird.f32 %v281
        %vm288 = vweird.f32 %v282
        %vm289 = vmor %vm287, %vm288
        %v290 = vsel %vm289, %v282, %v286
        %v291 = vand.u32 2147483647, %v281
        %vm292 = vcmp.eq.f32.partialorder %v291, 8.507059e+37
        %v293 = vand.u32 %v281, 2147483648
        %v294 = vor.u32 1.1754944e-38, %v293
        %v295 = vsel %vm292, %v294, %v290
        %v296 = vmul.f32 %v271, %v295
        %v297 = vmin.f32 %v296, 1.0
        %v298 = vmax.f32 %v297, -1.0
        %v299 = vadd.f32 %v298, 1.0
        %v300 = vmul.f32 %v257, %v299
        %v301 = vsel %vm240, %v300, 0.0
        %302 = vadd.xlane.f32.xlu0 %v301
        %v303 = vpop.xlane.xlu0 %302
        %v304 = vmul.f32 %v303, 0.03125
        %v305 = vsub.f32 %v300, %v304
        %v306 = vmul.f32 %v305, %v305
        %v307 = vsel %vm240, %v306, 0.0
        %308 = vadd.xlane.f32.xlu0 %v307
        %v309 = vpop.xlane.xlu0 %308
        %v310 = vmul.f32 %v309, 0.03125
        %v311 = vadd.f32 %v310, 1e-12
        %v312 = vrsqrt.pop %v311
        %v313 = vmul.f32 %v312, %v311
        %v314 = vmul.f32 %v313, %v312
        %v315 = vmul.f32 0.5, %v314
        %v316 = vsub.f32 1.5, %v315
        %v317 = vmul.f32 %v312, %v316
        %vm318 = vweird.f32 %v311
        %vm319 = vweird.f32 %v312
        %vm320 = vmor %vm318, %vm319
        %v321 = vsel %vm320, %v312, %v317
        %v322 = vmul.f32 %v305, %v321
        %v323 = vperm.slane %v226, 1
        %v324 = vmul.f32 %v323, %v322
        %v325 = vperm.slane %v226, 2
        %v326 = vadd.f32 %v324, %v325
        %327 = vst.msk [vmem:[%s218] sm:$0xff] %vm240, %v326
        %s328 = sand.u32 %s97, 1
        %s329 = scalar_lea.sflag [#allocation4], %s328
        %s330 = sand.u32 %s97, 1
        %s331 = smul.addr %s330, 8
        %s332 = scalar_lea.vmem [#allocation8], %s331
        // Predicated region
        $region45: #{tpu_custom_call.1} parent=31 // pred_check
          %p333 = pneg %p107
        $region46: #{tpu_custom_call.1} parent=31 // pred_check_branch
          %335 = sbr.rel (%p333) target = $region48
        $region47: #{tpu_custom_call.1} parent=31 // pred_region
          %337 = vsyncadd %s329, 0
          %s338 = smul.addr %s21, 8
          %s339 = scalar_lea.hbm %s3, %s338
          %s341 = sshll.u32 %s332, 4
          %s342 = int_to_ptr.vmem [resolvable:$true] %s341
          %s343 = sshll.u32 %s339, 4
          %s344 = int_to_ptr.hbm [resolvable:$true] %s343
          %346 = dma.vmem_to_hbm [thread:$0]  %s342, 128, %s344, %s329
        $region48: #{tpu_custom_call.1} parent=31 // pred_fallthru
          _
      $region32: #{tpu_custom_call.1} parent=5 // pred_fallthru
        _
      %p347 = scmp.le.s32.totalorder 2, %s16
      // Predicated region
      $region49: #{tpu_custom_call.1} parent=5 // pred_check
        %p348 = pneg %p347
      $region50: #{tpu_custom_call.1} parent=5 // pred_check_branch
        %350 = sbr.rel (%p348) target = $region52
      $region51: #{tpu_custom_call.1} parent=5 // pred_region
        %s351 = ssub.s32 %s16, 2
        // Predicated region
        $region53: #{tpu_custom_call.1} parent=51 // pred_check
          %p352 = pneg %p113
        $region54: #{tpu_custom_call.1} parent=51 // pred_check_branch
          %354 = sbr.rel (%p352) target = $region56
        $region55: #{tpu_custom_call.1} parent=51 // pred_region
          %s355 = sand.u32 %s98, 1
          %s356 = scalar_lea.sflag [#allocation4], %s355
          %s357 = sand.u32 %s98, 1
          %s358 = smul.addr %s357, 8
          %s359 = scalar_lea.vmem [#allocation8], %s358
          %361 = dma.done %s356, 128
        $region56: #{tpu_custom_call.1} parent=51 // pred_fallthru
          _
      $region52: #{tpu_custom_call.1} parent=5 // pred_fallthru
        _
    $region6: #{tpu_custom_call.1} parent=1 // loop_footer
      %s20 = sadd.s32 1, %s16
    $region7: #{tpu_custom_call.1} parent=1 // loop_footer_branch
      %15 = sbr.rel target = $region3
    $region8: #{tpu_custom_call.1} parent=1 // loop_exit
      _
    %362 = vsyncpa [#allocation3], 1
    %s363 = scalar_lea.sflag [#allocation3], 1
    %364 = vsyncpa %s363, 1
    %365 = vsyncpa [#allocation6], 1
    %366 = vsyncpa [#allocation4], 1
    %s367 = scalar_lea.sflag [#allocation4], 1
    %368 = vsyncpa %s367, 1

</llo_original>
